<compile_context>
chip_gen: v5e
topology: v5e:2x2
jax: 0.10.0
libtpu: 0.0.40
codegen_flags: <defaults>
</compile_context>

<pallas_src>
import math
from typing import NamedTuple

import jax
import jax.numpy as jnp
from jax import lax
from jax.experimental import pallas as pl
from jax.experimental.pallas import tpu as pltpu


def _round_up(a, b):
    return ((a + b - 1) // b) * b


def _chip_vmem_bytes():
    """Physical per-core VMEM; conservative fallback if the query is unavailable."""
    try:
        cap = int(pltpu.get_tpu_info().vmem_capacity_bytes)
        if cap > 0:
            return cap
    except Exception:
        pass
    return 64 * 1024 * 1024  # v7x per-core VMEM (smallest across v5e/v6e/v7x)


def _vmem_est(tm, tk, tn, in_bytes, out_bytes):
    """Rough VMEM footprint of one grid step (double-buffered in/out + f32 accumulator)."""
    return (2 * tm * tk * in_bytes            # x tile (double-buffered)
            + 2 * tk * 2 * tn * in_bytes      # packed [v|g] weight tile (double-buffered)
            + 2 * 2 * tn * 4                  # packed bias tile
            + 2 * tm * tn * out_bytes         # output tile (double-buffered)
            + tm * 2 * tn * 4)                # f32 accumulator scratch


def _pick_n_tiling(dim_out, tn_max=512):
    """Return (tn, padded_dim_out); tn % 128 == 0 and padded_dim_out % tn == 0.

    Prefers padding dim_out up over shrinking tn below 256 (small tn multiplies
    n_tiles -> more x re-streaming and per-grid-step overhead)."""
    dop = _round_up(dim_out, 128)
    tn_max = max(256, (tn_max // 128) * 128)
    if dop <= tn_max:
        return dop, dop
    best = None
    tn = tn_max
    while tn >= 256:
        padded = _round_up(dop, tn)
        key = (padded, -tn)
        if best is None or key < best[0]:
            best = (key, tn, padded)
        tn -= 128
    return best[1], best[2]


def _choose_tk(dim_in, tn, in_bytes, budget):
    """Return (tk, padded_dim_in).  K is tiled only when the full-K weight block would
    not fit the per-generation VMEM budget (e.g. large dim_in on v7x's 64 MiB)."""
    tm_probe = 256
    if _vmem_est(tm_probe, dim_in, tn, in_bytes, 4) <= budget:
        return dim_in, dim_in
    for tk in (2048, 1024, 512, 256, 128):
        if dim_in % tk == 0 and _vmem_est(tm_probe, tk, tn, in_bytes, 4) <= budget:
            return tk, dim_in
    tk = 512  # no nice divisor: zero-pad K (padded weight rows are zero -> exact result)
    return tk, _round_up(dim_in, tk)


class GegluParams(NamedTuple):
    w_packed: jax.Array   # (kp, n_tiles * 2 * tn): per-N-tile [value | gate] columns
    b_packed: jax.Array   # (1, n_tiles * 2 * tn), float32
    dim_in: int
    dim_out: int
    kp: int
    tk: int
    tn: int
    dop: int
    n_tiles: int


def prepare_geglu_params(weight, bias, *, compute_dtype=None, tn_max=512):
    """Repack the projection weight/bias ONCE (call at weight-load time, not per step).

    weight : (dim_in, 2*dim_out)   (transposed from torch's (2*dim_out, dim_in))
    bias   : (2*dim_out,)
    Each N tile of the packed weight holds its [value | gate] columns contiguously so
    the kernel issues a single fused x @ (tk, 2*tn) matmul per tile."""
    dim_in, two_dout = weight.shape
    assert two_dout % 2 == 0 and bias.shape == (two_dout,)
    dim_out = two_dout // 2

    if compute_dtype is not None:
        weight = weight.astype(compute_dtype)
    in_bytes = jnp.dtype(weight.dtype).itemsize

    tn, dop = _pick_n_tiling(dim_out, tn_max)
    n_tiles = dop // tn

    budget = int(0.70 * _chip_vmem_bytes())
    tk, kp = _choose_tk(dim_in, tn, in_bytes, budget)

    pad_n = dop - dim_out
    pad_k = kp - dim_in
    w_v, w_g = weight[:, :dim_out], weight[:, dim_out:]
    b_v, b_g = bias[:dim_out], bias[dim_out:]
    if pad_n or pad_k:
        w_v = jnp.pad(w_v, ((0, pad_k), (0, pad_n)))
        w_g = jnp.pad(w_g, ((0, pad_k), (0, pad_n)))
    if pad_n:
        b_v = jnp.pad(b_v, (0, pad_n))
        b_g = jnp.pad(b_g, (0, pad_n))
    w_packed = jnp.stack(
        [w_v.reshape(kp, n_tiles, tn), w_g.reshape(kp, n_tiles, tn)], axis=2
    ).reshape(kp, n_tiles * 2 * tn)
    b_packed = jnp.stack(
        [b_v.reshape(n_tiles, tn), b_g.reshape(n_tiles, tn)], axis=1
    ).reshape(1, n_tiles * 2 * tn).astype(jnp.float32)

    return GegluParams(w_packed, b_packed, dim_in, dim_out, kp, tk, tn, dop, n_tiles)


def _geglu_kernel(x_ref, w_ref, b_ref, o_ref, acc_ref):
    # x_ref  : (tm, tk)       tile of flattened tokens
    # w_ref  : (tk, 2*tn)     packed [value | gate] weight tile for this (K, N) block
    # b_ref  : (1, 2*tn)      packed bias (f32)
    # o_ref  : (tm, tn)
    # acc_ref: (tm, 2*tn) f32 accumulator, persists across the K grid axis
    k = pl.program_id(2)

    @pl.when(k == 0)
    def _():
        acc_ref[...] = jnp.zeros_like(acc_ref)

    acc_ref[...] += jnp.dot(x_ref[...], w_ref[...], preferred_element_type=jnp.float32)

    @pl.when(k == pl.num_programs(2) - 1)
    def _():
        tn = o_ref.shape[-1]
        proj = acc_ref[...] + b_ref[...]
        v = proj[:, :tn]                   # static, lane-aligned slices (tn % 128 == 0)
        g = proj[:, tn:]
        inv_sqrt2 = jnp.float32(0.7071067811865476)
        gelu_g = 0.5 * g * (1.0 + lax.erf(g * inv_sqrt2))   # exact erf GELU (torch default)
        o_ref[...] = (v * gelu_g).astype(o_ref.dtype)


def geglu_from_packed(x, params, *, tm_default=512):
    """GEGLU forward from pre-packed params.  x: (B, S, dim_in) -> (B, S, dim_out)."""
    B, S, dim_in = x.shape
    assert dim_in == params.dim_in
    out_dtype = x.dtype

    w_packed, b_packed = params.w_packed, params.b_packed
    kp, tk, tn, dop, n_tiles = params.kp, params.tk, params.tn, params.dop, params.n_tiles
    dim_out = params.dim_out

    cap = _chip_vmem_bytes()
    budget = int(0.70 * cap)
    in_bytes = jnp.dtype(w_packed.dtype).itemsize
    out_bytes = jnp.dtype(out_dtype).itemsize
    # sub-32-bit matmul inputs pack sublanes: keep tm a multiple of 16 (bf16) / 32 (int8)
    row_align = {4: 8, 2: 16, 1: 32}.get(in_bytes, 8)

    M = B * S
    x2d = x.reshape(M, dim_in)
    if x2d.dtype != w_packed.dtype:
        x2d = x2d.astype(w_packed.dtype)

    # ---- M tiling: shrink tm to fit the VMEM budget; prefer a tm that divides the row
    # count (avoids materializing a padded copy of x); use one ragged tile for small M.
    tm_cap = max(row_align, _round_up(min(tm_default, max(M, 1)), row_align))
    while tm_cap > 128 and _vmem_est(tm_cap, tk, tn, in_bytes, out_bytes) > budget:
        tm_cap = max(128, _round_up(tm_cap // 2, row_align))

    if M <= tm_cap:
        tm, Mp = M, M          # single M tile; ragged M allowed (block dim == full dim)
    else:
        tm = (tm_cap // row_align) * row_align
        Mp_align = _round_up(M, row_align)
        lo = max(row_align, tm // 2)
        t = tm
        while t >= lo:
            if Mp_align % t == 0:
                tm = t
                break
            t -= row_align
        Mp = _round_up(Mp_align, tm)
    m_tiles = Mp // tm

    pad_m = Mp - M
    pad_k = kp - dim_in
    if pad_m or pad_k:
        x2d = jnp.pad(x2d, ((0, pad_m), (0, pad_k)))

    k_tiles = kp // tk

    # ---- grid ordering: minimize HBM re-streaming; make the leading (parallel) axis
    # have >= 2 tiles when possible so v7x's 2 TensorCores both get work.
    x_bytes = Mp * kp * in_bytes
    w_bytes = kp * 2 * dop * in_bytes
    if k_tiles > 1:
        n_outer = n_tiles >= m_tiles   # traffic is order-independent once K is tiled
    else:
        # n-outer re-streams x (n_tiles-1) extra times; m-outer re-streams W instead
        n_outer = x_bytes * (n_tiles - 1) <= w_bytes * (m_tiles - 1)
    if n_outer and n_tiles == 1 and m_tiles > 1:
        n_outer = False
    elif (not n_outer) and m_tiles == 1 and n_tiles > 1:
        n_outer = True

    # NOTE: with k_tiles == 1 and N outermost, the weight/bias blocks only change on the
    # slow axis; pl.Buffered(1) there would free one (dim_in, 2*tn) buffer.  Left at the
    # default double-buffering since K-tiling already bounds the VMEM footprint.
    if n_outer:
        grid = (n_tiles, m_tiles, k_tiles)
        x_spec = pl.BlockSpec((tm, tk), lambda j, i, k: (i, k))
        w_spec = pl.BlockSpec((tk, 2 * tn), lambda j, i, k: (k, j))
        b_spec = pl.BlockSpec((1, 2 * tn), lambda j, i, k: (0, j))
        o_spec = pl.BlockSpec((tm, tn), lambda j, i, k: (i, j))
    else:
        grid = (m_tiles, n_tiles, k_tiles)
        x_spec = pl.BlockSpec((tm, tk), lambda i, j, k: (i, k))
        w_spec = pl.BlockSpec((tk, 2 * tn), lambda i, j, k: (k, j))
        b_spec = pl.BlockSpec((1, 2 * tn), lambda i, j, k: (0, j))
        o_spec = pl.BlockSpec((tm, tn), lambda i, j, k: (i, j))

    est = _vmem_est(tm, tk, tn, in_bytes, out_bytes)
    vmem_limit = int(min(cap, max(32 * 1024 * 1024, est + (8 << 20))))

    out2d = pl.pallas_call(
        _geglu_kernel,
        out_shape=jax.ShapeDtypeStruct((Mp, dop), out_dtype),
        grid_spec=pltpu.PrefetchScalarGridSpec(
            num_scalar_prefetch=0,
            grid=grid,
            in_specs=[x_spec, w_spec, b_spec],
            out_specs=o_spec,
            scratch_shapes=[pltpu.VMEM((tm, 2 * tn), jnp.float32)],
        ),
        compiler_params=pltpu.CompilerParams(
            dimension_semantics=("parallel", "parallel", "arbitrary"),
            vmem_limit_bytes=vmem_limit,
        ),
    )(x2d, w_packed, b_packed)

    if Mp != M or dop != dim_out:
        out2d = out2d[:M, :dim_out]
    return out2d.reshape(B, S, dim_out)


def geglu(x, weight, bias, *, compute_dtype=None, tn_max=512, tm_default=512):
    """Convenience wrapper.  In production, call prepare_geglu_params once at weight-load
    time and reuse it (the repack reads/writes the whole weight in HBM)."""
    params = prepare_geglu_params(weight, bias, compute_dtype=compute_dtype, tn_max=tn_max)
    return geglu_from_packed(x, params, tm_default=tm_default)


def geglu_reference(x, weight, bias):
    proj = jnp.einsum("bsi,io->bso", x, weight) + bias
    v, g = jnp.split(proj, 2, axis=-1)
    return v * jax.nn.gelu(g, approximate=False)


if __name__ == "__main__":
    def make_inputs(key, B, S, dim_in, dim_out):
        k_x, k_w, k_b = jax.random.split(key, 3)
        x = jax.random.normal(k_x, (B, S, dim_in), dtype=jnp.float32)
        bound = 1.0 / math.sqrt(dim_in)
        weight = jax.random.uniform(k_w, (dim_in, 2 * dim_out), jnp.float32, -bound, bound)
        bias = jax.random.uniform(k_b, (2 * dim_out,), jnp.float32, -bound, bound)
        return x, weight, bias

    # Case 1: f32, aligned dims; pre-packed params path (repack hoisted out of the call).
    x, w, b = make_inputs(jax.random.PRNGKey(0), 2, 64, 32, 128)
    params = prepare_geglu_params(w, b)
    out = jax.block_until_ready(geglu_from_packed(x, params))
    ref = geglu_reference(x, w, b)
    assert out.shape == ref.shape
    assert jnp.allclose(out, ref, atol=1e-4, rtol=1e-4)

    # Case 2: ragged token count + non-multiple-of-128 dim_out (exercises padding paths).
    x2, w2, b2 = make_inputs(jax.random.PRNGKey(1), 2, 40, 48, 192)
    out2 = jax.block_until_ready(geglu(x2, w2, b2))
    assert jnp.allclose(out2, geglu_reference(x2, w2, b2), atol=1e-4, rtol=1e-4)

    # Case 3: bf16 matmul inputs (MXU-native on v5e/v6e/v7x), f32 accumulate/GELU.
    out3 = jax.block_until_ready(geglu(x, w, b, compute_dtype=jnp.bfloat16))
    assert jnp.allclose(out3, ref, atol=5e-2, rtol=5e-2)

    # Case 4: multiple M tiles (M > tm) -> exercises grid ordering + no-pad tm divisor.
    x4, w4, b4 = make_inputs(jax.random.PRNGKey(2), 2, 320, 64, 256)
    out4 = jax.block_until_ready(geglu(x4, w4, b4))
    assert jnp.allclose(out4, geglu_reference(x4, w4, b4), atol=1e-4, rtol=1e-4)

    print("KERNEL_OK")
</pallas_src>

<mosaic_0001>
module attributes {stable_mosaic.version = 11 : i64} {
  func.func @_geglu_kernel(%arg0: i32, %arg1: i32, %arg2: i32, %arg3: memref<128x32xf32, #tpu.memory_space<vmem>>, %arg4: memref<32x256xf32, #tpu.memory_space<vmem>>, %arg5: memref<1x256xf32, #tpu.memory_space<vmem>>, %arg6: memref<128x128xf32, #tpu.memory_space<vmem>>, %arg7: memref<128x256xf32, #tpu.memory_space<vmem>>) attributes {dimension_semantics = [#tpu.dimension_semantics<parallel>, #tpu.dimension_semantics<parallel>, #tpu.dimension_semantics<arbitrary>], iteration_bounds = array<i64: 1, 1, 1>, scalar_prefetch = 0 : i64, scratch_operands = 1 : i64, tpu.core_type = #tpu.core_type<tc>, window_params = [{transform_indices = @transform_0, window_bounds = array<i64: 128, 32>}, {transform_indices = @transform_1, window_bounds = array<i64: 32, 256>}, {transform_indices = @transform_2, window_bounds = array<i64: 1, 256>}, {transform_indices = @transform_3, window_bounds = array<i64: 128, 128>}]} {
    %c0_i32 = arith.constant 0 : i32
    %0 = arith.cmpi eq, %arg2, %c0_i32 : i32
    %1 = arith.extui %0 : i1 to i32
    %c0_i32_0 = arith.constant 0 : i32
    %2 = arith.cmpi ne, %1, %c0_i32_0 : i32
    scf.if %2 {
      %cst_10 = arith.constant 0.000000e+00 : f32
      %12 = vector.broadcast %cst_10 : f32 to vector<128x256xf32>
      %c0_11 = arith.constant 0 : index
      %c0_12 = arith.constant 0 : index
      %13 = vector.load %arg7[%c0_11, %c0_12] : memref<128x256xf32, #tpu.memory_space<vmem>>, vector<128x256xf32>
      tpu.vector_store %arg7[%c0_11, %c0_12], %12 {strides = array<i32>} : memref<128x256xf32, #tpu.memory_space<vmem>>, vector<128x256xf32>,
    } else {
    }
    %c0 = arith.constant 0 : index
    %c0_1 = arith.constant 0 : index
    %3 = vector.load %arg7[%c0, %c0_1] : memref<128x256xf32, #tpu.memory_space<vmem>>, vector<128x256xf32>
    %c0_2 = arith.constant 0 : index
    %c0_3 = arith.constant 0 : index
    %4 = vector.load %arg3[%c0_2, %c0_3] : memref<128x32xf32, #tpu.memory_space<vmem>>, vector<128x32xf32>
    %c0_4 = arith.constant 0 : index
    %c0_5 = arith.constant 0 : index
    %5 = vector.load %arg4[%c0_4, %c0_5] : memref<32x256xf32, #tpu.memory_space<vmem>>, vector<32x256xf32>
    %cst = arith.constant dense<0.000000e+00> : vector<128x256xf32>
    %6 = tpu.matmul %4, %5, %cst {dimension_numbers = #tpu.dot_dimension_numbers<[1], [0], [0], [1], [0, 0, 1, 1], [], []>} : vector<128x32xf32>, vector<32x256xf32>, vector<128x256xf32> -> vector<128x256xf32>
    %7 = arith.addf %3, %6 : vector<128x256xf32>
    %c0_6 = arith.constant 0 : index
    %c0_7 = arith.constant 0 : index
    %8 = vector.load %arg7[%c0_6, %c0_7] : memref<128x256xf32, #tpu.memory_space<vmem>>, vector<128x256xf32>
    tpu.vector_store %arg7[%c0_6, %c0_7], %7 {strides = array<i32>} : memref<128x256xf32, #tpu.memory_space<vmem>>, vector<128x256xf32>,
    %c0_i32_8 = arith.constant 0 : i32
    %9 = arith.cmpi eq, %arg2, %c0_i32_8 : i32
    %10 = arith.extui %9 : i1 to i32
    %c0_i32_9 = arith.constant 0 : i32
    %11 = arith.cmpi ne, %10, %c0_i32_9 : i32
    scf.if %11 {
      %c0_10 = arith.constant 0 : index
      %c0_11 = arith.constant 0 : index
      %12 = vector.load %arg7[%c0_10, %c0_11] : memref<128x256xf32, #tpu.memory_space<vmem>>, vector<128x256xf32>
      %c0_12 = arith.constant 0 : index
      %c0_13 = arith.constant 0 : index
      %13 = vector.load %arg5[%c0_12, %c0_13] : memref<1x256xf32, #tpu.memory_space<vmem>>, vector<1x256xf32>
      %14 = vector.broadcast %13 : vector<1x256xf32> to vector<128x256xf32>
      %15 = arith.addf %12, %14 : vector<128x256xf32>
      %16 = vector.extract_strided_slice %15 {offsets = [0, 0], sizes = [128, 128], strides = [1, 1]} : vector<128x256xf32> to vector<128x128xf32>
      %17 = vector.extract_strided_slice %15 {offsets = [0, 128], sizes = [128, 128], strides = [1, 1]} : vector<128x256xf32> to vector<128x128xf32>
      %cst_14 = arith.constant 5.000000e-01 : f32
      %18 = vector.broadcast %cst_14 : f32 to vector<128x128xf32>
      %19 = arith.mulf %18, %17 : vector<128x128xf32>
      %cst_15 = arith.constant 0.707106769 : f32
      %20 = vector.broadcast %cst_15 : f32 to vector<128x128xf32>
      %21 = arith.mulf %17, %20 : vector<128x128xf32>
      %22 = math.erf %21 : vector<128x128xf32>
      %cst_16 = arith.constant 1.000000e+00 : f32
      %23 = vector.broadcast %cst_16 : f32 to vector<128x128xf32>
      %24 = arith.addf %23, %22 : vector<128x128xf32>
      %25 = arith.mulf %19, %24 : vector<128x128xf32>
      %26 = arith.mulf %16, %25 : vector<128x128xf32>
      %c0_17 = arith.constant 0 : index
      %c0_18 = arith.constant 0 : index
      %27 = vector.load %arg6[%c0_17, %c0_18] : memref<128x128xf32, #tpu.memory_space<vmem>>, vector<128x128xf32>
      tpu.vector_store %arg6[%c0_17, %c0_18], %26 {strides = array<i32>} : memref<128x128xf32, #tpu.memory_space<vmem>>, vector<128x128xf32>,
    } else {
    }
    return
  }
  func.func @transform_0(%arg0: i32, %arg1: i32, %arg2: i32) -> (i32, i32) {
    %c0_i32 = arith.constant 0 : i32
    return %arg1, %arg2 : i32, i32
  }
  func.func @transform_1(%arg0: i32, %arg1: i32, %arg2: i32) -> (i32, i32) {
    %c0_i32 = arith.constant 0 : i32
    return %arg2, %arg0 : i32, i32
  }
  func.func @transform_2(%arg0: i32, %arg1: i32, %arg2: i32) -> (i32, i32) {
    %c0_i32 = arith.constant 0 : i32
    %c0_i32_0 = arith.constant 0 : i32
    return %c0_i32, %arg0 : i32, i32
  }
  func.func @transform_3(%arg0: i32, %arg1: i32, %arg2: i32) -> (i32, i32) {
    %c0_i32 = arith.constant 0 : i32
    return %arg1, %arg0 : i32, i32
  }
}

</mosaic_0001>

<llo_original>
// kernel: tpu_custom_call.1
$region0: #{tpu_custom_call.1}
  #allocation0 [shape = 'u32[]', space=smem, size = 0x4, offset = 0x4, fixed_abs, tag = 'smem constant byte address 0x4 - core index']
  #allocation1 [shape = 'u32[72,128]{1,0:T(1,128)}', space=vmem, size = 0x9000, scoped, tag = 'internal scratch']
  #allocation2 [shape = 'f32[128,256]{1,0:T(8,128)}', space=vmem, size = 0x20000, scoped, tag = 'scratch operand']
  %s0 = inlined_call_operand.vmem [shape: f32[128,32], index: 0, kind: input, shape index: {}]
  %s1 = inlined_call_operand.vmem [shape: f32[32,256], index: 1, kind: input, shape index: {}]
  %s2 = inlined_call_operand.vmem [shape: f32[1,256], index: 2, kind: input, shape index: {}]
  %s3 = inlined_call_operand.hbm [shape: f32[128,128], index: 3, kind: output, shape index: {}]
  %s4 = sld [smem:[#allocation0]]
  $region30: #{tpu_custom_call.1} parent=0
    _
  %s6 = ssub.s32 1, %s4
  %s7 = scalar_select 0, %s6, %s4
  $region1: #{tpu_custom_call.1} parent=0
    #allocation3 [shape = 'u8[65536]{0}', space=vmem, size = 0x10000, scoped, tag = 'output window, operand 0, single buffered']
    #allocation4 [shape = 's32[1]{0}', space=sflag, size = 0x4, scoped, tag = 'scoped memory for tpu_custom_call.1']
    %8 = vsyncpa [#allocation4], 0
    // Predicated region
    $region2: #{tpu_custom_call.1} parent=1 // pred_check
      _
    $region3: #{tpu_custom_call.1} parent=1 // pred_check_branch
      %10 = sbr.rel (0) target = $region5
    $region4: #{tpu_custom_call.1} parent=1 // pred_region
      _
    $region5: #{tpu_custom_call.1} parent=1 // pred_fallthru
      _
    // Predicated region
    $region6: #{tpu_custom_call.1} parent=1 // pred_check
      _
    $region7: #{tpu_custom_call.1} parent=1 // pred_check_branch
      %12 = sbr.rel (0) target = $region9
    $region8: #{tpu_custom_call.1} parent=1 // pred_region
      _
    $region9: #{tpu_custom_call.1} parent=1 // pred_fallthru
      _
    // Predicated region
    $region10: #{tpu_custom_call.1} parent=1 // pred_check
      _
    $region11: #{tpu_custom_call.1} parent=1 // pred_check_branch
      %14 = sbr.rel (0) target = $region13
    $region12: #{tpu_custom_call.1} parent=1 // pred_region
      _
    $region13: #{tpu_custom_call.1} parent=1 // pred_fallthru
      _
    %p15 = scmp.eq.s32.totalorder 0, 0
    // Predicated region
    $region14: #{tpu_custom_call.1} parent=1 // pred_check
      %p16 = pneg %p15
    $region15: #{tpu_custom_call.1} parent=1 // pred_check_branch
      %18 = sbr.rel (%p16) target = $region17
    $region16: #{tpu_custom_call.1} parent=1 // pred_region
      %19 = vst [vmem:[#allocation2] sm:$0xff] 0.0
      %20 = vst [vmem:[#allocation2 + $0x8] sm:$0xff] 0.0
      %21 = vst [vmem:[#allocation2 + $0x10] sm:$0xff] 0.0
      %22 = vst [vmem:[#allocation2 + $0x18] sm:$0xff] 0.0
      %23 = vst [vmem:[#allocation2 + $0x20] sm:$0xff] 0.0
      %24 = vst [vmem:[#allocation2 + $0x28] sm:$0xff] 0.0
      %25 = vst [vmem:[#allocation2 + $0x30] sm:$0xff] 0.0
      %26 = vst [vmem:[#allocation2 + $0x38] sm:$0xff] 0.0
      %27 = vst [vmem:[#allocation2 + $0x40] sm:$0xff] 0.0
      %28 = vst [vmem:[#allocation2 + $0x48] sm:$0xff] 0.0
      %29 = vst [vmem:[#allocation2 + $0x50] sm:$0xff] 0.0
      %30 = vst [vmem:[#allocation2 + $0x58] sm:$0xff] 0.0
      %31 = vst [vmem:[#allocation2 + $0x60] sm:$0xff] 0.0
      %32 = vst [vmem:[#allocation2 + $0x68] sm:$0xff] 0.0
      %33 = vst [vmem:[#allocation2 + $0x70] sm:$0xff] 0.0
      %34 = vst [vmem:[#allocation2 + $0x78] sm:$0xff] 0.0
      %35 = vst [vmem:[#allocation2 + $0x80] sm:$0xff] 0.0
      %36 = vst [vmem:[#allocation2 + $0x88] sm:$0xff] 0.0
      %37 = vst [vmem:[#allocation2 + $0x90] sm:$0xff] 0.0
      %38 = vst [vmem:[#allocation2 + $0x98] sm:$0xff] 0.0
      %39 = vst [vmem:[#allocation2 + $0xa0] sm:$0xff] 0.0
      %40 = vst [vmem:[#allocation2 + $0xa8] sm:$0xff] 0.0
      %41 = vst [vmem:[#allocation2 + $0xb0] sm:$0xff] 0.0
      %42 = vst [vmem:[#allocation2 + $0xb8] sm:$0xff] 0.0
      %43 = vst [vmem:[#allocation2 + $0xc0] sm:$0xff] 0.0
      %44 = vst [vmem:[#allocation2 + $0xc8] sm:$0xff] 0.0
      %45 = vst [vmem:[#allocation2 + $0xd0] sm:$0xff] 0.0
      %46 = vst [vmem:[#allocation2 + $0xd8] sm:$0xff] 0.0
      %47 = vst [vmem:[#allocation2 + $0xe0] sm:$0xff] 0.0
      %48 = vst [vmem:[#allocation2 + $0xe8] sm:$0xff] 0.0
      %49 = vst [vmem:[#allocation2 + $0xf0] sm:$0xff] 0.0
      %50 = vst [vmem:[#allocation2 + $0xf8] sm:$0xff] 0.0
    $region17: #{tpu_custom_call.1} parent=1 // pred_fallthru
      _
    %v51 = vld [vmem:[#allocation2] sm:$0xff]
    %v52 = vld [vmem:[#allocation2 + $0x8] sm:$0xff]
    %v53 = vld [vmem:[#allocation2 + $0x10] sm:$0xff]
    %v54 = vld [vmem:[#allocation2 + $0x18] sm:$0xff]
    %v55 = vld [vmem:[#allocation2 + $0x20] sm:$0xff]
    %v56 = vld [vmem:[#allocation2 + $0x28] sm:$0xff]
    %v57 = vld [vmem:[#allocation2 + $0x30] sm:$0xff]
    %v58 = vld [vmem:[#allocation2 + $0x38] sm:$0xff]
    %v59 = vld [vmem:[#allocation2 + $0x40] sm:$0xff]
    %v60 = vld [vmem:[#allocation2 + $0x48] sm:$0xff]
    %v61 = vld [vmem:[#allocation2 + $0x50] sm:$0xff]
    %v62 = vld [vmem:[#allocation2 + $0x58] sm:$0xff]
    %v63 = vld [vmem:[#allocation2 + $0x60] sm:$0xff]
    %v64 = vld [vmem:[#allocation2 + $0x68] sm:$0xff]
    %v65 = vld [vmem:[#allocation2 + $0x70] sm:$0xff]
    %v66 = vld [vmem:[#allocation2 + $0x78] sm:$0xff]
    %v67 = vld [vmem:[#allocation2 + $0x80] sm:$0xff]
    %v68 = vld [vmem:[#allocation2 + $0x88] sm:$0xff]
    %v69 = vld [vmem:[#allocation2 + $0x90] sm:$0xff]
    %v70 = vld [vmem:[#allocation2 + $0x98] sm:$0xff]
    %v71 = vld [vmem:[#allocation2 + $0xa0] sm:$0xff]
    %v72 = vld [vmem:[#allocation2 + $0xa8] sm:$0xff]
    %v73 = vld [vmem:[#allocation2 + $0xb0] sm:$0xff]
    %v74 = vld [vmem:[#allocation2 + $0xb8] sm:$0xff]
    %v75 = vld [vmem:[#allocation2 + $0xc0] sm:$0xff]
    %v76 = vld [vmem:[#allocation2 + $0xc8] sm:$0xff]
    %v77 = vld [vmem:[#allocation2 + $0xd0] sm:$0xff]
    %v78 = vld [vmem:[#allocation2 + $0xd8] sm:$0xff]
    %v79 = vld [vmem:[#allocation2 + $0xe0] sm:$0xff]
    %v80 = vld [vmem:[#allocation2 + $0xe8] sm:$0xff]
    %v81 = vld [vmem:[#allocation2 + $0xf0] sm:$0xff]
    %v82 = vld [vmem:[#allocation2 + $0xf8] sm:$0xff]
    %v83 = vld [vmem:[%s0] sm:$0xff]
    %v84 = vld [vmem:[%s0 + $0x8] sm:$0xff]
    %v85 = vld [vmem:[%s0 + $0x10] sm:$0xff]
    %v86 = vld [vmem:[%s0 + $0x18] sm:$0xff]
    %v87 = vld [vmem:[%s0 + $0x20] sm:$0xff]
    %v88 = vld [vmem:[%s0 + $0x28] sm:$0xff]
    %v89 = vld [vmem:[%s0 + $0x30] sm:$0xff]
    %v90 = vld [vmem:[%s0 + $0x38] sm:$0xff]
    %v91 = vld [vmem:[%s0 + $0x40] sm:$0xff]
    %v92 = vld [vmem:[%s0 + $0x48] sm:$0xff]
    %v93 = vld [vmem:[%s0 + $0x50] sm:$0xff]
    %v94 = vld [vmem:[%s0 + $0x58] sm:$0xff]
    %v95 = vld [vmem:[%s0 + $0x60] sm:$0xff]
    %v96 = vld [vmem:[%s0 + $0x68] sm:$0xff]
    %v97 = vld [vmem:[%s0 + $0x70] sm:$0xff]
    %v98 = vld [vmem:[%s0 + $0x78] sm:$0xff]
    %v99 = vld [vmem:[%s1] sm:$0xff]
    %v100 = vld [vmem:[%s1 + $0x8] sm:$0xff]
    %v101 = vld [vmem:[%s1 + $0x10] sm:$0xff]
    %v102 = vld [vmem:[%s1 + $0x18] sm:$0xff]
    %v103 = vld [vmem:[%s1 + $0x20] sm:$0xff]
    %v104 = vld [vmem:[%s1 + $0x28] sm:$0xff]
    %v105 = vld [vmem:[%s1 + $0x30] sm:$0xff]
    %v106 = vld [vmem:[%s1 + $0x38] sm:$0xff]
    %vm107 = vcmask 261120
    %v109 = vsel %vm107, %v83, 0
    %v112 = vsel %vm107, %v84, 0
    %v115 = vsel %vm107, %v85, 0
    %v118 = vsel %vm107, %v86, 0
    %v121 = vsel %vm107, %v87, 0
    %v124 = vsel %vm107, %v88, 0
    %v127 = vsel %vm107, %v89, 0
    %v130 = vsel %vm107, %v90, 0
    %v133 = vsel %vm107, %v91, 0
    %v136 = vsel %vm107, %v92, 0
    %v139 = vsel %vm107, %v93, 0
    %v142 = vsel %vm107, %v94, 0
    %v145 = vsel %vm107, %v95, 0
    %v148 = vsel %vm107, %v96, 0
    %v151 = vsel %vm107, %v97, 0
    %v154 = vsel %vm107, %v98, 0
    %156 = vmatpush.msra.mxu0 0.0
    %157 = vmatpush.msra.mxu0 0.0
    %158 = vmatpush.msra.mxu0 0.0
    %159 = vmatpush.msra.mxu0 0.0
    %160 = vmatpush.msra.mxu0 0.0
    %161 = vmatpush.msra.mxu0 0.0
    %162 = vmatpush.msra.mxu0 0.0
    %163 = vmatpush.msra.mxu0 0.0
    %164 = vmatpush.msra.mxu0 0.0
    %165 = vmatpush.msra.mxu0 0.0
    %166 = vmatpush.msra.mxu0 0.0
    %167 = vmatpush.msra.mxu0 0.0
    %168 = vmatpush.msra.mxu0 %v105
    %169 = vmatpush.msra.mxu0 %v103
    %170 = vmatpush.msra.mxu0 %v101
    %171 = vmatpush.msra.mxu0 %v99
    %172 = vmatmul.f32.gmra.mxu0 %v109
    %v173 = vpop.f32.mrf.mxu0
    %v174 = vadd.f32 0.0, %v173
    %175 = vmatmul.f32.gmra.mxu0 %v112
    %v176 = vpop.f32.mrf.mxu0
    %v177 = vadd.f32 0.0, %v176
    %178 = vmatmul.f32.gmra.mxu0 %v115
    %v179 = vpop.f32.mrf.mxu0
    %v180 = vadd.f32 0.0, %v179
    %181 = vmatmul.f32.gmra.mxu0 %v118
    %v182 = vpop.f32.mrf.mxu0
    %v183 = vadd.f32 0.0, %v182
    %184 = vmatmul.f32.gmra.mxu0 %v121
    %v185 = vpop.f32.mrf.mxu0
    %v186 = vadd.f32 0.0, %v185
    %187 = vmatmul.f32.gmra.mxu0 %v124
    %v188 = vpop.f32.mrf.mxu0
    %v189 = vadd.f32 0.0, %v188
    %190 = vmatmul.f32.gmra.mxu0 %v127
    %v191 = vpop.f32.mrf.mxu0
    %v192 = vadd.f32 0.0, %v191
    %193 = vmatmul.f32.gmra.mxu0 %v130
    %v194 = vpop.f32.mrf.mxu0
    %v195 = vadd.f32 0.0, %v194
    %196 = vmatmul.f32.gmra.mxu0 %v133
    %v197 = vpop.f32.mrf.mxu0
    %v198 = vadd.f32 0.0, %v197
    %199 = vmatmul.f32.gmra.mxu0 %v136
    %v200 = vpop.f32.mrf.mxu0
    %v201 = vadd.f32 0.0, %v200
    %202 = vmatmul.f32.gmra.mxu0 %v139
    %v203 = vpop.f32.mrf.mxu0
    %v204 = vadd.f32 0.0, %v203
    %205 = vmatmul.f32.gmra.mxu0 %v142
    %v206 = vpop.f32.mrf.mxu0
    %v207 = vadd.f32 0.0, %v206
    %208 = vmatmul.f32.gmra.mxu0 %v145
    %v209 = vpop.f32.mrf.mxu0
    %v210 = vadd.f32 0.0, %v209
    %211 = vmatmul.f32.gmra.mxu0 %v148
    %v212 = vpop.f32.mrf.mxu0
    %v213 = vadd.f32 0.0, %v212
    %214 = vmatmul.f32.gmra.mxu0 %v151
    %v215 = vpop.f32.mrf.mxu0
    %v216 = vadd.f32 0.0, %v215
    %217 = vmatmul.f32.gmra.mxu0 %v154
    %v218 = vpop.f32.mrf.mxu0
    %v219 = vadd.f32 0.0, %v218
    %220 = vdwg.mxu0
    %221 = vmatpush.msra.mxu0 0.0
    %222 = vmatpush.msra.mxu0 0.0
    %223 = vmatpush.msra.mxu0 0.0
    %224 = vmatpush.msra.mxu0 0.0
    %225 = vmatpush.msra.mxu0 0.0
    %226 = vmatpush.msra.mxu0 0.0
    %227 = vmatpush.msra.mxu0 0.0
    %228 = vmatpush.msra.mxu0 0.0
    %229 = vmatpush.msra.mxu0 0.0
    %230 = vmatpush.msra.mxu0 0.0
    %231 = vmatpush.msra.mxu0 0.0
    %232 = vmatpush.msra.mxu0 0.0
    %233 = vmatpush.msra.mxu0 %v106
    %234 = vmatpush.msra.mxu0 %v104
    %235 = vmatpush.msra.mxu0 %v102
    %236 = vmatpush.msra.mxu0 %v100
    %237 = vmatmul.f32.gmra.mxu0 %v109
    %v238 = vpop.f32.mrf.mxu0
    %v239 = vadd.f32 0.0, %v238
    %240 = vmatmul.f32.gmra.mxu0 %v112
    %v241 = vpop.f32.mrf.mxu0
    %v242 = vadd.f32 0.0, %v241
    %243 = vmatmul.f32.gmra.mxu0 %v115
    %v244 = vpop.f32.mrf.mxu0
    %v245 = vadd.f32 0.0, %v244
    %246 = vmatmul.f32.gmra.mxu0 %v118
    %v247 = vpop.f32.mrf.mxu0
    %v248 = vadd.f32 0.0, %v247
    %249 = vmatmul.f32.gmra.mxu0 %v121
    %v250 = vpop.f32.mrf.mxu0
    %v251 = vadd.f32 0.0, %v250
    %252 = vmatmul.f32.gmra.mxu0 %v124
    %v253 = vpop.f32.mrf.mxu0
    %v254 = vadd.f32 0.0, %v253
    %255 = vmatmul.f32.gmra.mxu0 %v127
    %v256 = vpop.f32.mrf.mxu0
    %v257 = vadd.f32 0.0, %v256
    %258 = vmatmul.f32.gmra.mxu0 %v130
    %v259 = vpop.f32.mrf.mxu0
    %v260 = vadd.f32 0.0, %v259
    %261 = vmatmul.f32.gmra.mxu0 %v133
    %v262 = vpop.f32.mrf.mxu0
    %v263 = vadd.f32 0.0, %v262
    %264 = vmatmul.f32.gmra.mxu0 %v136
    %v265 = vpop.f32.mrf.mxu0
    %v266 = vadd.f32 0.0, %v265
    %267 = vmatmul.f32.gmra.mxu0 %v139
    %v268 = vpop.f32.mrf.mxu0
    %v269 = vadd.f32 0.0, %v268
    %270 = vmatmul.f32.gmra.mxu0 %v142
    %v271 = vpop.f32.mrf.mxu0
    %v272 = vadd.f32 0.0, %v271
    %273 = vmatmul.f32.gmra.mxu0 %v145
    %v274 = vpop.f32.mrf.mxu0
    %v275 = vadd.f32 0.0, %v274
    %276 = vmatmul.f32.gmra.mxu0 %v148
    %v277 = vpop.f32.mrf.mxu0
    %v278 = vadd.f32 0.0, %v277
    %279 = vmatmul.f32.gmra.mxu0 %v151
    %v280 = vpop.f32.mrf.mxu0
    %v281 = vadd.f32 0.0, %v280
    %282 = vmatmul.f32.gmra.mxu0 %v154
    %v283 = vpop.f32.mrf.mxu0
    %v284 = vadd.f32 0.0, %v283
    %285 = vdwg.mxu0
    %v286 = vadd.f32 %v51, %v174
    %v287 = vadd.f32 %v52, %v239
    %v288 = vadd.f32 %v53, %v177
    %v289 = vadd.f32 %v54, %v242
    %v290 = vadd.f32 %v55, %v180
    %v291 = vadd.f32 %v56, %v245
    %v292 = vadd.f32 %v57, %v183
    %v293 = vadd.f32 %v58, %v248
    %v294 = vadd.f32 %v59, %v186
    %v295 = vadd.f32 %v60, %v251
    %v296 = vadd.f32 %v61, %v189
    %v297 = vadd.f32 %v62, %v254
    %v298 = vadd.f32 %v63, %v192
    %v299 = vadd.f32 %v64, %v257
    %v300 = vadd.f32 %v65, %v195
    %v301 = vadd.f32 %v66, %v260
    %v302 = vadd.f32 %v67, %v198
    %v303 = vadd.f32 %v68, %v263
    %v304 = vadd.f32 %v69, %v201
    %v305 = vadd.f32 %v70, %v266
    %v306 = vadd.f32 %v71, %v204
    %v307 = vadd.f32 %v72, %v269
    %v308 = vadd.f32 %v73, %v207
    %v309 = vadd.f32 %v74, %v272
    %v310 = vadd.f32 %v75, %v210
    %v311 = vadd.f32 %v76, %v275
    %v312 = vadd.f32 %v77, %v213
    %v313 = vadd.f32 %v78, %v278
    %v314 = vadd.f32 %v79, %v216
    %v315 = vadd.f32 %v80, %v281
    %v316 = vadd.f32 %v81, %v219
    %v317 = vadd.f32 %v82, %v284
    %318 = vst [vmem:[#allocation2] sm:$0xff] %v286
    %319 = vst [vmem:[#allocation2 + $0x8] sm:$0xff] %v287
    %320 = vst [vmem:[#allocation2 + $0x10] sm:$0xff] %v288
    %321 = vst [vmem:[#allocation2 + $0x18] sm:$0xff] %v289
    %322 = vst [vmem:[#allocation2 + $0x20] sm:$0xff] %v290
    %323 = vst [vmem:[#allocation2 + $0x28] sm:$0xff] %v291
    %324 = vst [vmem:[#allocation2 + $0x30] sm:$0xff] %v292
    %325 = vst [vmem:[#allocation2 + $0x38] sm:$0xff] %v293
    %326 = vst [vmem:[#allocation2 + $0x40] sm:$0xff] %v294
    %327 = vst [vmem:[#allocation2 + $0x48] sm:$0xff] %v295
    %328 = vst [vmem:[#allocation2 + $0x50] sm:$0xff] %v296
    %329 = vst [vmem:[#allocation2 + $0x58] sm:$0xff] %v297
    %330 = vst [vmem:[#allocation2 + $0x60] sm:$0xff] %v298
    %331 = vst [vmem:[#allocation2 + $0x68] sm:$0xff] %v299
    %332 = vst [vmem:[#allocation2 + $0x70] sm:$0xff] %v300
    %333 = vst [vmem:[#allocation2 + $0x78] sm:$0xff] %v301
    %334 = vst [vmem:[#allocation2 + $0x80] sm:$0xff] %v302
    %335 = vst [vmem:[#allocation2 + $0x88] sm:$0xff] %v303
    %336 = vst [vmem:[#allocation2 + $0x90] sm:$0xff] %v304
    %337 = vst [vmem:[#allocation2 + $0x98] sm:$0xff] %v305
    %338 = vst [vmem:[#allocation2 + $0xa0] sm:$0xff] %v306
    %339 = vst [vmem:[#allocation2 + $0xa8] sm:$0xff] %v307
    %340 = vst [vmem:[#allocation2 + $0xb0] sm:$0xff] %v308
    %341 = vst [vmem:[#allocation2 + $0xb8] sm:$0xff] %v309
    %342 = vst [vmem:[#allocation2 + $0xc0] sm:$0xff] %v310
    %343 = vst [vmem:[#allocation2 + $0xc8] sm:$0xff] %v311
    %344 = vst [vmem:[#allocation2 + $0xd0] sm:$0xff] %v312
    %345 = vst [vmem:[#allocation2 + $0xd8] sm:$0xff] %v313
    %346 = vst [vmem:[#allocation2 + $0xe0] sm:$0xff] %v314
    %347 = vst [vmem:[#allocation2 + $0xe8] sm:$0xff] %v315
    %348 = vst [vmem:[#allocation2 + $0xf0] sm:$0xff] %v316
    %349 = vst [vmem:[#allocation2 + $0xf8] sm:$0xff] %v317
    // Predicated region
    $region18: #{tpu_custom_call.1} parent=1 // pred_check
      %p350 = pneg %p15
    $region19: #{tpu_custom_call.1} parent=1 // pred_check_branch
      %352 = sbr.rel (%p350) target = $region21
    $region20: #{tpu_custom_call.1} parent=1 // pred_region
      %v353 = vld [vmem:[#allocation2] sm:$0xff]
      %v354 = vld [vmem:[#allocation2 + $0x8] sm:$0xff]
      %v355 = vld [vmem:[#allocation2 + $0x10] sm:$0xff]
      %v356 = vld [vmem:[#allocation2 + $0x18] sm:$0xff]
      %v357 = vld [vmem:[#allocation2 + $0x20] sm:$0xff]
      %v358 = vld [vmem:[#allocation2 + $0x28] sm:$0xff]
      %v359 = vld [vmem:[#allocation2 + $0x30] sm:$0xff]
      %v360 = vld [vmem:[#allocation2 + $0x38] sm:$0xff]
      %v361 = vld [vmem:[#allocation2 + $0x40] sm:$0xff]
      %v362 = vld [vmem:[#allocation2 + $0x48] sm:$0xff]
      %v363 = vld [vmem:[#allocation2 + $0x50] sm:$0xff]
      %v364 = vld [vmem:[#allocation2 + $0x58] sm:$0xff]
      %v365 = vld [vmem:[#allocation2 + $0x60] sm:$0xff]
      %v366 = vld [vmem:[#allocation2 + $0x68] sm:$0xff]
      %v367 = vld [vmem:[#allocation2 + $0x70] sm:$0xff]
      %v368 = vld [vmem:[#allocation2 + $0x78] sm:$0xff]
      %v369 = vld [vmem:[#allocation2 + $0x80] sm:$0xff]
      %v370 = vld [vmem:[#allocation2 + $0x88] sm:$0xff]
      %v371 = vld [vmem:[#allocation2 + $0x90] sm:$0xff]
      %v372 = vld [vmem:[#allocation2 + $0x98] sm:$0xff]
      %v373 = vld [vmem:[#allocation2 + $0xa0] sm:$0xff]
      %v374 = vld [vmem:[#allocation2 + $0xa8] sm:$0xff]
      %v375 = vld [vmem:[#allocation2 + $0xb0] sm:$0xff]
      %v376 = vld [vmem:[#allocation2 + $0xb8] sm:$0xff]
      %v377 = vld [vmem:[#allocation2 + $0xc0] sm:$0xff]
      %v378 = vld [vmem:[#allocation2 + $0xc8] sm:$0xff]
      %v379 = vld [vmem:[#allocation2 + $0xd0] sm:$0xff]
      %v380 = vld [vmem:[#allocation2 + $0xd8] sm:$0xff]
      %v381 = vld [vmem:[#allocation2 + $0xe0] sm:$0xff]
      %v382 = vld [vmem:[#allocation2 + $0xe8] sm:$0xff]
      %v383 = vld [vmem:[#allocation2 + $0xf0] sm:$0xff]
      %v384 = vld [vmem:[#allocation2 + $0xf8] sm:$0xff]
      %v385 = vld [vmem:[%s2] sm:$0x3]
      %v387 = vperm.slane %v385, 0
      %v388 = vperm.slane %v385, 1
      %v391 = vadd.f32 %v353, %v387
      %v392 = vadd.f32 %v354, %v388
      %v393 = vadd.f32 %v355, %v387
      %v394 = vadd.f32 %v356, %v388
      %v395 = vadd.f32 %v357, %v387
      %v396 = vadd.f32 %v358, %v388
      %v397 = vadd.f32 %v359, %v387
      %v398 = vadd.f32 %v360, %v388
      %v399 = vadd.f32 %v361, %v387
      %v400 = vadd.f32 %v362, %v388
      %v401 = vadd.f32 %v363, %v387
      %v402 = vadd.f32 %v364, %v388
      %v403 = vadd.f32 %v365, %v387
      %v404 = vadd.f32 %v366, %v388
      %v405 = vadd.f32 %v367, %v387
      %v406 = vadd.f32 %v368, %v388
      %v407 = vadd.f32 %v369, %v387
      %v408 = vadd.f32 %v370, %v388
      %v409 = vadd.f32 %v371, %v387
      %v410 = vadd.f32 %v372, %v388
      %v411 = vadd.f32 %v373, %v387
      %v412 = vadd.f32 %v374, %v388
      %v413 = vadd.f32 %v375, %v387
      %v414 = vadd.f32 %v376, %v388
      %v415 = vadd.f32 %v377, %v387
      %v416 = vadd.f32 %v378, %v388
      %v417 = vadd.f32 %v379, %v387
      %v418 = vadd.f32 %v380, %v388
      %v419 = vadd.f32 %v381, %v387
      %v420 = vadd.f32 %v382, %v388
      %v421 = vadd.f32 %v383, %v387
      %v422 = vadd.f32 %v384, %v388
      %v423 = vmul.f32 %v392, 0.5
      %v424 = vmul.f32 %v394, 0.5
      %v425 = vmul.f32 %v396, 0.5
      %v426 = vmul.f32 %v398, 0.5
      %v427 = vmul.f32 %v400, 0.5
      %v428 = vmul.f32 %v402, 0.5
      %v429 = vmul.f32 %v404, 0.5
      %v430 = vmul.f32 %v406, 0.5
      %v431 = vmul.f32 %v408, 0.5
      %v432 = vmul.f32 %v410, 0.5
      %v433 = vmul.f32 %v412, 0.5
      %v434 = vmul.f32 %v414, 0.5
      %v435 = vmul.f32 %v416, 0.5
      %v436 = vmul.f32 %v418, 0.5
      %v437 = vmul.f32 %v420, 0.5
      %v438 = vmul.f32 %v422, 0.5
      %v439 = vmul.f32 %v392, 0.70710677
      %v440 = vmul.f32 %v394, 0.70710677
      %v441 = vmul.f32 %v396, 0.70710677
      %v442 = vmul.f32 %v398, 0.70710677
      %v443 = vmul.f32 %v400, 0.70710677
      %v444 = vmul.f32 %v402, 0.70710677
      %v445 = vmul.f32 %v404, 0.70710677
      %v446 = vmul.f32 %v406, 0.70710677
      %v447 = vmul.f32 %v408, 0.70710677
      %v448 = vmul.f32 %v410, 0.70710677
      %v449 = vmul.f32 %v412, 0.70710677
      %v450 = vmul.f32 %v414, 0.70710677
      %v451 = vmul.f32 %v416, 0.70710677
      %v452 = vmul.f32 %v418, 0.70710677
      %v453 = vmul.f32 %v420, 0.70710677
      %v454 = vmul.f32 %v422, 0.70710677
      %v455 = vmul.f32 %v439, %v439
      %v456 = vmin.f32 16.0, %v455
      %v457 = vmul.f32 %v456, 2.1237322e-06
      %v458 = vadd.f32 %v457, 0.00028619796
      %v459 = vmul.f32 %v456, %v458
      %v460 = vadd.f32 %v459, 0.0036580483
      %v461 = vmul.f32 %v456, %v460
      %v462 = vadd.f32 %v461, 0.05243302
      %v463 = vmul.f32 %v456, %v462
      %v464 = vadd.f32 %v463, 0.18741608
      %v465 = vmul.f32 %v456, %v464
      %v466 = vadd.f32 %v465, 1.1283791
      %v467 = vmul.f32 %v439, %v466
      %v468 = vmul.f32 %v456, 3.8918573e-05
      %v469 = vadd.f32 %v468, 0.001143296
      %v470 = vmul.f32 %v456, %v469
      %v471 = vadd.f32 %v470, 0.014752088
      %v472 = vmul.f32 %v456, %v471
      %v473 = vadd.f32 %v472, 0.112945676
      %v474 = vmul.f32 %v456, %v473
      %v475 = vadd.f32 %v474, 0.4994258
      %v476 = vmul.f32 %v456, %v475
      %v477 = vadd.f32 %v476, 1.0
      %v478 = vrcp.pop %v477
      %v479 = vmul.f32 %v477, %v478
      %v480 = vsub.f32 1.0, %v479
      %v481 = vmul.f32 %v478, %v480
      %v482 = vadd.f32 %v478, %v481
      %vm483 = vweird.f32 %v477
      %vm484 = vweird.f32 %v478
      %vm485 = vmor %vm483, %vm484
      %v486 = vsel %vm485, %v478, %v482
      %v487 = vand.u32 2147483647, %v477
      %vm488 = vcmp.eq.f32.partialorder %v487, 8.507059e+37
      %v489 = vand.u32 %v477, 2147483648
      %v490 = vor.u32 1.1754944e-38, %v489
      %v491 = vsel %vm488, %v490, %v486
      %v492 = vmul.f32 %v467, %v491
      %v493 = vmin.f32 %v492, 1.0
      %v494 = vmax.f32 %v493, -1.0
      %v495 = vmul.f32 %v440, %v440
      %v496 = vmin.f32 16.0, %v495
      %v497 = vmul.f32 %v496, 2.1237322e-06
      %v498 = vadd.f32 %v497, 0.00028619796
      %v499 = vmul.f32 %v496, %v498
      %v500 = vadd.f32 %v499, 0.0036580483
      %v501 = vmul.f32 %v496, %v500
      %v502 = vadd.f32 %v501, 0.05243302
      %v503 = vmul.f32 %v496, %v502
      %v504 = vadd.f32 %v503, 0.18741608
      %v505 = vmul.f32 %v496, %v504
      %v506 = vadd.f32 %v505, 1.1283791
      %v507 = vmul.f32 %v440, %v506
      %v508 = vmul.f32 %v496, 3.8918573e-05
      %v509 = vadd.f32 %v508, 0.001143296
      %v510 = vmul.f32 %v496, %v509
      %v511 = vadd.f32 %v510, 0.014752088
      %v512 = vmul.f32 %v496, %v511
      %v513 = vadd.f32 %v512, 0.112945676
      %v514 = vmul.f32 %v496, %v513
      %v515 = vadd.f32 %v514, 0.4994258
      %v516 = vmul.f32 %v496, %v515
      %v517 = vadd.f32 %v516, 1.0
      %v518 = vrcp.pop %v517
      %v519 = vmul.f32 %v517, %v518
      %v520 = vsub.f32 1.0, %v519
      %v521 = vmul.f32 %v518, %v520
      %v522 = vadd.f32 %v518, %v521
      %vm523 = vweird.f32 %v517
      %vm524 = vweird.f32 %v518
      %vm525 = vmor %vm523, %vm524
      %v526 = vsel %vm525, %v518, %v522
      %v527 = vand.u32 2147483647, %v517
      %vm528 = vcmp.eq.f32.partialorder %v527, 8.507059e+37
      %v529 = vand.u32 %v517, 2147483648
      %v530 = vor.u32 1.1754944e-38, %v529
      %v531 = vsel %vm528, %v530, %v526
      %v532 = vmul.f32 %v507, %v531
      %v533 = vmin.f32 %v532, 1.0
      %v534 = vmax.f32 %v533, -1.0
      %v535 = vmul.f32 %v441, %v441
      %v536 = vmin.f32 16.0, %v535
      %v537 = vmul.f32 %v536, 2.1237322e-06
      %v538 = vadd.f32 %v537, 0.00028619796
      %v539 = vmul.f32 %v536, %v538
      %v540 = vadd.f32 %v539, 0.0036580483
      %v541 = vmul.f32 %v536, %v540
      %v542 = vadd.f32 %v541, 0.05243302
      %v543 = vmul.f32 %v536, %v542
      %v544 = vadd.f32 %v543, 0.18741608
      %v545 = vmul.f32 %v536, %v544
      %v546 = vadd.f32 %v545, 1.1283791
      %v547 = vmul.f32 %v441, %v546
      %v548 = vmul.f32 %v536, 3.8918573e-05
      %v549 = vadd.f32 %v548, 0.001143296
      %v550 = vmul.f32 %v536, %v549
      %v551 = vadd.f32 %v550, 0.014752088
      %v552 = vmul.f32 %v536, %v551
      %v553 = vadd.f32 %v552, 0.112945676
      %v554 = vmul.f32 %v536, %v553
      %v555 = vadd.f32 %v554, 0.4994258
      %v556 = vmul.f32 %v536, %v555
      %v557 = vadd.f32 %v556, 1.0
      %v558 = vrcp.pop %v557
      %v559 = vmul.f32 %v557, %v558
      %v560 = vsub.f32 1.0, %v559
      %v561 = vmul.f32 %v558, %v560
      %v562 = vadd.f32 %v558, %v561
      %vm563 = vweird.f32 %v557
      %vm564 = vweird.f32 %v558
      %vm565 = vmor %vm563, %vm564
      %v566 = vsel %vm565, %v558, %v562
      %v567 = vand.u32 2147483647, %v557
      %vm568 = vcmp.eq.f32.partialorder %v567, 8.507059e+37
      %v569 = vand.u32 %v557, 2147483648
      %v570 = vor.u32 1.1754944e-38, %v569
      %v571 = vsel %vm568, %v570, %v566
      %v572 = vmul.f32 %v547, %v571
      %v573 = vmin.f32 %v572, 1.0
      %v574 = vmax.f32 %v573, -1.0
      %v575 = vmul.f32 %v442, %v442
      %v576 = vmin.f32 16.0, %v575
      %v577 = vmul.f32 %v576, 2.1237322e-06
      %v578 = vadd.f32 %v577, 0.00028619796
      %v579 = vmul.f32 %v576, %v578
      %v580 = vadd.f32 %v579, 0.0036580483
      %v581 = vmul.f32 %v576, %v580
      %v582 = vadd.f32 %v581, 0.05243302
      %v583 = vmul.f32 %v576, %v582
      %v584 = vadd.f32 %v583, 0.18741608
      %v585 = vmul.f32 %v576, %v584
      %v586 = vadd.f32 %v585, 1.1283791
      %v587 = vmul.f32 %v442, %v586
      %v588 = vmul.f32 %v576, 3.8918573e-05
      %v589 = vadd.f32 %v588, 0.001143296
      %v590 = vmul.f32 %v576, %v589
      %v591 = vadd.f32 %v590, 0.014752088
      %v592 = vmul.f32 %v576, %v591
      %v593 = vadd.f32 %v592, 0.112945676
      %v594 = vmul.f32 %v576, %v593
      %v595 = vadd.f32 %v594, 0.4994258
      %v596 = vmul.f32 %v576, %v595
      %v597 = vadd.f32 %v596, 1.0
      %v598 = vrcp.pop %v597
      %v599 = vmul.f32 %v597, %v598
      %v600 = vsub.f32 1.0, %v599
      %v601 = vmul.f32 %v598, %v600
      %v602 = vadd.f32 %v598, %v601
      %vm603 = vweird.f32 %v597
      %vm604 = vweird.f32 %v598
      %vm605 = vmor %vm603, %vm604
      %v606 = vsel %vm605, %v598, %v602
      %v607 = vand.u32 2147483647, %v597
      %vm608 = vcmp.eq.f32.partialorder %v607, 8.507059e+37
      %v609 = vand.u32 %v597, 2147483648
      %v610 = vor.u32 1.1754944e-38, %v609
      %v611 = vsel %vm608, %v610, %v606
      %v612 = vmul.f32 %v587, %v611
      %v613 = vmin.f32 %v612, 1.0
      %v614 = vmax.f32 %v613, -1.0
      %v615 = vmul.f32 %v443, %v443
      %v616 = vmin.f32 16.0, %v615
      %v617 = vmul.f32 %v616, 2.1237322e-06
      %v618 = vadd.f32 %v617, 0.00028619796
      %v619 = vmul.f32 %v616, %v618
      %v620 = vadd.f32 %v619, 0.0036580483
      %v621 = vmul.f32 %v616, %v620
      %v622 = vadd.f32 %v621, 0.05243302
      %v623 = vmul.f32 %v616, %v622
      %v624 = vadd.f32 %v623, 0.18741608
      %v625 = vmul.f32 %v616, %v624
      %v626 = vadd.f32 %v625, 1.1283791
      %v627 = vmul.f32 %v443, %v626
      %v628 = vmul.f32 %v616, 3.8918573e-05
      %v629 = vadd.f32 %v628, 0.001143296
      %v630 = vmul.f32 %v616, %v629
      %v631 = vadd.f32 %v630, 0.014752088
      %v632 = vmul.f32 %v616, %v631
      %v633 = vadd.f32 %v632, 0.112945676
      %v634 = vmul.f32 %v616, %v633
      %v635 = vadd.f32 %v634, 0.4994258
      %v636 = vmul.f32 %v616, %v635
      %v637 = vadd.f32 %v636, 1.0
      %v638 = vrcp.pop %v637
      %v639 = vmul.f32 %v637, %v638
      %v640 = vsub.f32 1.0, %v639
      %v641 = vmul.f32 %v638, %v640
      %v642 = vadd.f32 %v638, %v641
      %vm643 = vweird.f32 %v637
      %vm644 = vweird.f32 %v638
      %vm645 = vmor %vm643, %vm644
      %v646 = vsel %vm645, %v638, %v642
      %v647 = vand.u32 2147483647, %v637
      %vm648 = vcmp.eq.f32.partialorder %v647, 8.507059e+37
      %v649 = vand.u32 %v637, 2147483648
      %v650 = vor.u32 1.1754944e-38, %v649
      %v651 = vsel %vm648, %v650, %v646
      %v652 = vmul.f32 %v627, %v651
      %v653 = vmin.f32 %v652, 1.0
      %v654 = vmax.f32 %v653, -1.0
      %v655 = vmul.f32 %v444, %v444
      %v656 = vmin.f32 16.0, %v655
      %v657 = vmul.f32 %v656, 2.1237322e-06
      %v658 = vadd.f32 %v657, 0.00028619796
      %v659 = vmul.f32 %v656, %v658
      %v660 = vadd.f32 %v659, 0.0036580483
      %v661 = vmul.f32 %v656, %v660
      %v662 = vadd.f32 %v661, 0.05243302
      %v663 = vmul.f32 %v656, %v662
      %v664 = vadd.f32 %v663, 0.18741608
      %v665 = vmul.f32 %v656, %v664
      %v666 = vadd.f32 %v665, 1.1283791
      %v667 = vmul.f32 %v444, %v666
      %v668 = vmul.f32 %v656, 3.8918573e-05
      %v669 = vadd.f32 %v668, 0.001143296
      %v670 = vmul.f32 %v656, %v669
      %v671 = vadd.f32 %v670, 0.014752088
      %v672 = vmul.f32 %v656, %v671
      %v673 = vadd.f32 %v672, 0.112945676
      %v674 = vmul.f32 %v656, %v673
      %v675 = vadd.f32 %v674, 0.4994258
      %v676 = vmul.f32 %v656, %v675
      %v677 = vadd.f32 %v676, 1.0
      %v678 = vrcp.pop %v677
      %v679 = vmul.f32 %v677, %v678
      %v680 = vsub.f32 1.0, %v679
      %v681 = vmul.f32 %v678, %v680
      %v682 = vadd.f32 %v678, %v681
      %vm683 = vweird.f32 %v677
      %vm684 = vweird.f32 %v678
      %vm685 = vmor %vm683, %vm684
      %v686 = vsel %vm685, %v678, %v682
      %v687 = vand.u32 2147483647, %v677
      %vm688 = vcmp.eq.f32.partialorder %v687, 8.507059e+37
      %v689 = vand.u32 %v677, 2147483648
      %v690 = vor.u32 1.1754944e-38, %v689
      %v691 = vsel %vm688, %v690, %v686
      %v692 = vmul.f32 %v667, %v691
      %v693 = vmin.f32 %v692, 1.0
      %v694 = vmax.f32 %v693, -1.0
      %v695 = vmul.f32 %v445, %v445
      %v696 = vmin.f32 16.0, %v695
      %v697 = vmul.f32 %v696, 2.1237322e-06
      %v698 = vadd.f32 %v697, 0.00028619796
      %v699 = vmul.f32 %v696, %v698
      %v700 = vadd.f32 %v699, 0.0036580483
      %v701 = vmul.f32 %v696, %v700
      %v702 = vadd.f32 %v701, 0.05243302
      %v703 = vmul.f32 %v696, %v702
      %v704 = vadd.f32 %v703, 0.18741608
      %v705 = vmul.f32 %v696, %v704
      %v706 = vadd.f32 %v705, 1.1283791
      %v707 = vmul.f32 %v445, %v706
      %v708 = vmul.f32 %v696, 3.8918573e-05
      %v709 = vadd.f32 %v708, 0.001143296
      %v710 = vmul.f32 %v696, %v709
      %v711 = vadd.f32 %v710, 0.014752088
      %v712 = vmul.f32 %v696, %v711
      %v713 = vadd.f32 %v712, 0.112945676
      %v714 = vmul.f32 %v696, %v713
      %v715 = vadd.f32 %v714, 0.4994258
      %v716 = vmul.f32 %v696, %v715
      %v717 = vadd.f32 %v716, 1.0
      %v718 = vrcp.pop %v717
      %v719 = vmul.f32 %v717, %v718
      %v720 = vsub.f32 1.0, %v719
      %v721 = vmul.f32 %v718, %v720
      %v722 = vadd.f32 %v718, %v721
      %vm723 = vweird.f32 %v717
      %vm724 = vweird.f32 %v718
      %vm725 = vmor %vm723, %vm724
      %v726 = vsel %vm725, %v718, %v722
      %v727 = vand.u32 2147483647, %v717
      %vm728 = vcmp.eq.f32.partialorder %v727, 8.507059e+37
      %v729 = vand.u32 %v717, 2147483648
      %v730 = vor.u32 1.1754944e-38, %v729
      %v731 = vsel %vm728, %v730, %v726
      %v732 = vmul.f32 %v707, %v731
      %v733 = vmin.f32 %v732, 1.0
      %v734 = vmax.f32 %v733, -1.0
      %v735 = vmul.f32 %v446, %v446
      %v736 = vmin.f32 16.0, %v735
      %v737 = vmul.f32 %v736, 2.1237322e-06
      %v738 = vadd.f32 %v737, 0.00028619796
      %v739 = vmul.f32 %v736, %v738
      %v740 = vadd.f32 %v739, 0.0036580483
      %v741 = vmul.f32 %v736, %v740
      %v742 = vadd.f32 %v741, 0.05243302
      %v743 = vmul.f32 %v736, %v742
      %v744 = vadd.f32 %v743, 0.18741608
      %v745 = vmul.f32 %v736, %v744
      %v746 = vadd.f32 %v745, 1.1283791
      %v747 = vmul.f32 %v446, %v746
      %v748 = vmul.f32 %v736, 3.8918573e-05
      %v749 = vadd.f32 %v748, 0.001143296
      %v750 = vmul.f32 %v736, %v749
      %v751 = vadd.f32 %v750, 0.014752088
      %v752 = vmul.f32 %v736, %v751
      %v753 = vadd.f32 %v752, 0.112945676
      %v754 = vmul.f32 %v736, %v753
      %v755 = vadd.f32 %v754, 0.4994258
      %v756 = vmul.f32 %v736, %v755
      %v757 = vadd.f32 %v756, 1.0
      %v758 = vrcp.pop %v757
      %v759 = vmul.f32 %v757, %v758
      %v760 = vsub.f32 1.0, %v759
      %v761 = vmul.f32 %v758, %v760
      %v762 = vadd.f32 %v758, %v761
      %vm763 = vweird.f32 %v757
      %vm764 = vweird.f32 %v758
      %vm765 = vmor %vm763, %vm764
      %v766 = vsel %vm765, %v758, %v762
      %v767 = vand.u32 2147483647, %v757
      %vm768 = vcmp.eq.f32.partialorder %v767, 8.507059e+37
      %v769 = vand.u32 %v757, 2147483648
      %v770 = vor.u32 1.1754944e-38, %v769
      %v771 = vsel %vm768, %v770, %v766
      %v772 = vmul.f32 %v747, %v771
      %v773 = vmin.f32 %v772, 1.0
      %v774 = vmax.f32 %v773, -1.0
      %v775 = vmul.f32 %v447, %v447
      %v776 = vmin.f32 16.0, %v775
      %v777 = vmul.f32 %v776, 2.1237322e-06
      %v778 = vadd.f32 %v777, 0.00028619796
      %v779 = vmul.f32 %v776, %v778
      %v780 = vadd.f32 %v779, 0.0036580483
      %v781 = vmul.f32 %v776, %v780
      %v782 = vadd.f32 %v781, 0.05243302
      %v783 = vmul.f32 %v776, %v782
      %v784 = vadd.f32 %v783, 0.18741608
      %v785 = vmul.f32 %v776, %v784
      %v786 = vadd.f32 %v785, 1.1283791
      %v787 = vmul.f32 %v447, %v786
      %v788 = vmul.f32 %v776, 3.8918573e-05
      %v789 = vadd.f32 %v788, 0.001143296
      %v790 = vmul.f32 %v776, %v789
      %v791 = vadd.f32 %v790, 0.014752088
      %v792 = vmul.f32 %v776, %v791
      %v793 = vadd.f32 %v792, 0.112945676
      %v794 = vmul.f32 %v776, %v793
      %v795 = vadd.f32 %v794, 0.4994258
      %v796 = vmul.f32 %v776, %v795
      %v797 = vadd.f32 %v796, 1.0
      %v798 = vrcp.pop %v797
      %v799 = vmul.f32 %v797, %v798
      %v800 = vsub.f32 1.0, %v799
      %v801 = vmul.f32 %v798, %v800
      %v802 = vadd.f32 %v798, %v801
      %vm803 = vweird.f32 %v797
      %vm804 = vweird.f32 %v798
      %vm805 = vmor %vm803, %vm804
      %v806 = vsel %vm805, %v798, %v802
      %v807 = vand.u32 2147483647, %v797
      %vm808 = vcmp.eq.f32.partialorder %v807, 8.507059e+37
      %v809 = vand.u32 %v797, 2147483648
      %v810 = vor.u32 1.1754944e-38, %v809
      %v811 = vsel %vm808, %v810, %v806
      %v812 = vmul.f32 %v787, %v811
      %v813 = vmin.f32 %v812, 1.0
      %v814 = vmax.f32 %v813, -1.0
      %v815 = vmul.f32 %v448, %v448
      %v816 = vmin.f32 16.0, %v815
      %v817 = vmul.f32 %v816, 2.1237322e-06
      %v818 = vadd.f32 %v817, 0.00028619796
      %v819 = vmul.f32 %v816, %v818
      %v820 = vadd.f32 %v819, 0.0036580483
      %v821 = vmul.f32 %v816, %v820
      %v822 = vadd.f32 %v821, 0.05243302
      %v823 = vmul.f32 %v816, %v822
      %v824 = vadd.f32 %v823, 0.18741608
      %v825 = vmul.f32 %v816, %v824
      %v826 = vadd.f32 %v825, 1.1283791
      %v827 = vmul.f32 %v448, %v826
      %v828 = vmul.f32 %v816, 3.8918573e-05
      %v829 = vadd.f32 %v828, 0.001143296
      %v830 = vmul.f32 %v816, %v829
      %v831 = vadd.f32 %v830, 0.014752088
      %v832 = vmul.f32 %v816, %v831
      %v833 = vadd.f32 %v832, 0.112945676
      %v834 = vmul.f32 %v816, %v833
      %v835 = vadd.f32 %v834, 0.4994258
      %v836 = vmul.f32 %v816, %v835
      %v837 = vadd.f32 %v836, 1.0
      %v838 = vrcp.pop %v837
      %v839 = vmul.f32 %v837, %v838
      %v840 = vsub.f32 1.0, %v839
      %v841 = vmul.f32 %v838, %v840
      %v842 = vadd.f32 %v838, %v841
      %vm843 = vweird.f32 %v837
      %vm844 = vweird.f32 %v838
      %vm845 = vmor %vm843, %vm844
      %v846 = vsel %vm845, %v838, %v842
      %v847 = vand.u32 2147483647, %v837
      %vm848 = vcmp.eq.f32.partialorder %v847, 8.507059e+37
      %v849 = vand.u32 %v837, 2147483648
      %v850 = vor.u32 1.1754944e-38, %v849
      %v851 = vsel %vm848, %v850, %v846
      %v852 = vmul.f32 %v827, %v851
      %v853 = vmin.f32 %v852, 1.0
      %v854 = vmax.f32 %v853, -1.0
      %v855 = vmul.f32 %v449, %v449
      %v856 = vmin.f32 16.0, %v855
      %v857 = vmul.f32 %v856, 2.1237322e-06
      %v858 = vadd.f32 %v857, 0.00028619796
      %v859 = vmul.f32 %v856, %v858
      %v860 = vadd.f32 %v859, 0.0036580483
      %v861 = vmul.f32 %v856, %v860
      %v862 = vadd.f32 %v861, 0.05243302
      %v863 = vmul.f32 %v856, %v862
      %v864 = vadd.f32 %v863, 0.18741608
      %v865 = vmul.f32 %v856, %v864
      %v866 = vadd.f32 %v865, 1.1283791
      %v867 = vmul.f32 %v449, %v866
      %v868 = vmul.f32 %v856, 3.8918573e-05
      %v869 = vadd.f32 %v868, 0.001143296
      %v870 = vmul.f32 %v856, %v869
      %v871 = vadd.f32 %v870, 0.014752088
      %v872 = vmul.f32 %v856, %v871
      %v873 = vadd.f32 %v872, 0.112945676
      %v874 = vmul.f32 %v856, %v873
      %v875 = vadd.f32 %v874, 0.4994258
      %v876 = vmul.f32 %v856, %v875
      %v877 = vadd.f32 %v876, 1.0
      %v878 = vrcp.pop %v877
      %v879 = vmul.f32 %v877, %v878
      %v880 = vsub.f32 1.0, %v879
      %v881 = vmul.f32 %v878, %v880
      %v882 = vadd.f32 %v878, %v881
      %vm883 = vweird.f32 %v877
      %vm884 = vweird.f32 %v878
      %vm885 = vmor %vm883, %vm884
      %v886 = vsel %vm885, %v878, %v882
      %v887 = vand.u32 2147483647, %v877
      %vm888 = vcmp.eq.f32.partialorder %v887, 8.507059e+37
      %v889 = vand.u32 %v877, 2147483648
      %v890 = vor.u32 1.1754944e-38, %v889
      %v891 = vsel %vm888, %v890, %v886
      %v892 = vmul.f32 %v867, %v891
      %v893 = vmin.f32 %v892, 1.0
      %v894 = vmax.f32 %v893, -1.0
      %v895 = vmul.f32 %v450, %v450
      %v896 = vmin.f32 16.0, %v895
      %v897 = vmul.f32 %v896, 2.1237322e-06
      %v898 = vadd.f32 %v897, 0.00028619796
      %v899 = vmul.f32 %v896, %v898
      %v900 = vadd.f32 %v899, 0.0036580483
      %v901 = vmul.f32 %v896, %v900
      %v902 = vadd.f32 %v901, 0.05243302
      %v903 = vmul.f32 %v896, %v902
      %v904 = vadd.f32 %v903, 0.18741608
      %v905 = vmul.f32 %v896, %v904
      %v906 = vadd.f32 %v905, 1.1283791
      %v907 = vmul.f32 %v450, %v906
      %v908 = vmul.f32 %v896, 3.8918573e-05
      %v909 = vadd.f32 %v908, 0.001143296
      %v910 = vmul.f32 %v896, %v909
      %v911 = vadd.f32 %v910, 0.014752088
      %v912 = vmul.f32 %v896, %v911
      %v913 = vadd.f32 %v912, 0.112945676
      %v914 = vmul.f32 %v896, %v913
      %v915 = vadd.f32 %v914, 0.4994258
      %v916 = vmul.f32 %v896, %v915
      %v917 = vadd.f32 %v916, 1.0
      %v918 = vrcp.pop %v917
      %v919 = vmul.f32 %v917, %v918
      %v920 = vsub.f32 1.0, %v919
      %v921 = vmul.f32 %v918, %v920
      %v922 = vadd.f32 %v918, %v921
      %vm923 = vweird.f32 %v917
      %vm924 = vweird.f32 %v918
      %vm925 = vmor %vm923, %vm924
      %v926 = vsel %vm925, %v918, %v922
      %v927 = vand.u32 2147483647, %v917
      %vm928 = vcmp.eq.f32.partialorder %v927, 8.507059e+37
      %v929 = vand.u32 %v917, 2147483648
      %v930 = vor.u32 1.1754944e-38, %v929
      %v931 = vsel %vm928, %v930, %v926
      %v932 = vmul.f32 %v907, %v931
      %v933 = vmin.f32 %v932, 1.0
      %v934 = vmax.f32 %v933, -1.0
      %v935 = vmul.f32 %v451, %v451
      %v936 = vmin.f32 16.0, %v935
      %v937 = vmul.f32 %v936, 2.1237322e-06
      %v938 = vadd.f32 %v937, 0.00028619796
      %v939 = vmul.f32 %v936, %v938
      %v940 = vadd.f32 %v939, 0.0036580483
      %v941 = vmul.f32 %v936, %v940
      %v942 = vadd.f32 %v941, 0.05243302
      %v943 = vmul.f32 %v936, %v942
      %v944 = vadd.f32 %v943, 0.18741608
      %v945 = vmul.f32 %v936, %v944
      %v946 = vadd.f32 %v945, 1.1283791
      %v947 = vmul.f32 %v451, %v946
      %v948 = vmul.f32 %v936, 3.8918573e-05
      %v949 = vadd.f32 %v948, 0.001143296
      %v950 = vmul.f32 %v936, %v949
      %v951 = vadd.f32 %v950, 0.014752088
      %v952 = vmul.f32 %v936, %v951
      %v953 = vadd.f32 %v952, 0.112945676
      %v954 = vmul.f32 %v936, %v953
      %v955 = vadd.f32 %v954, 0.4994258
      %v956 = vmul.f32 %v936, %v955
      %v957 = vadd.f32 %v956, 1.0
      %v958 = vrcp.pop %v957
      %v959 = vmul.f32 %v957, %v958
      %v960 = vsub.f32 1.0, %v959
      %v961 = vmul.f32 %v958, %v960
      %v962 = vadd.f32 %v958, %v961
      %vm963 = vweird.f32 %v957
      %vm964 = vweird.f32 %v958
      %vm965 = vmor %vm963, %vm964
      %v966 = vsel %vm965, %v958, %v962
      %v967 = vand.u32 2147483647, %v957
      %vm968 = vcmp.eq.f32.partialorder %v967, 8.507059e+37
      %v969 = vand.u32 %v957, 2147483648
      %v970 = vor.u32 1.1754944e-38, %v969
      %v971 = vsel %vm968, %v970, %v966
      %v972 = vmul.f32 %v947, %v971
      %v973 = vmin.f32 %v972, 1.0
      %v974 = vmax.f32 %v973, -1.0
      %v975 = vmul.f32 %v452, %v452
      %v976 = vmin.f32 16.0, %v975
      %v977 = vmul.f32 %v976, 2.1237322e-06
      %v978 = vadd.f32 %v977, 0.00028619796
      %v979 = vmul.f32 %v976, %v978
      %v980 = vadd.f32 %v979, 0.0036580483
      %v981 = vmul.f32 %v976, %v980
      %v982 = vadd.f32 %v981, 0.05243302
      %v983 = vmul.f32 %v976, %v982
      %v984 = vadd.f32 %v983, 0.18741608
      %v985 = vmul.f32 %v976, %v984
      %v986 = vadd.f32 %v985, 1.1283791
      %v987 = vmul.f32 %v452, %v986
      %v988 = vmul.f32 %v976, 3.8918573e-05
      %v989 = vadd.f32 %v988, 0.001143296
      %v990 = vmul.f32 %v976, %v989
      %v991 = vadd.f32 %v990, 0.014752088
      %v992 = vmul.f32 %v976, %v991
      %v993 = vadd.f32 %v992, 0.112945676
      %v994 = vmul.f32 %v976, %v993
      %v995 = vadd.f32 %v994, 0.4994258
      %v996 = vmul.f32 %v976, %v995
      %v997 = vadd.f32 %v996, 1.0
      %v998 = vrcp.pop %v997
      %v999 = vmul.f32 %v997, %v998
      %v1000 = vsub.f32 1.0, %v999
      %v1001 = vmul.f32 %v998, %v1000
      %v1002 = vadd.f32 %v998, %v1001
      %vm1003 = vweird.f32 %v997
      %vm1004 = vweird.f32 %v998
      %vm1005 = vmor %vm1003, %vm1004
      %v1006 = vsel %vm1005, %v998, %v1002
      %v1007 = vand.u32 2147483647, %v997
      %vm1008 = vcmp.eq.f32.partialorder %v1007, 8.507059e+37
      %v1009 = vand.u32 %v997, 2147483648
      %v1010 = vor.u32 1.1754944e-38, %v1009
      %v1011 = vsel %vm1008, %v1010, %v1006
      %v1012 = vmul.f32 %v987, %v1011
      %v1013 = vmin.f32 %v1012, 1.0
      %v1014 = vmax.f32 %v1013, -1.0
      %v1015 = vmul.f32 %v453, %v453
      %v1016 = vmin.f32 16.0, %v1015
      %v1017 = vmul.f32 %v1016, 2.1237322e-06
      %v1018 = vadd.f32 %v1017, 0.00028619796
      %v1019 = vmul.f32 %v1016, %v1018
      %v1020 = vadd.f32 %v1019, 0.0036580483
      %v1021 = vmul.f32 %v1016, %v1020
      %v1022 = vadd.f32 %v1021, 0.05243302
      %v1023 = vmul.f32 %v1016, %v1022
      %v1024 = vadd.f32 %v1023, 0.18741608
      %v1025 = vmul.f32 %v1016, %v1024
      %v1026 = vadd.f32 %v1025, 1.1283791
      %v1027 = vmul.f32 %v453, %v1026
      %v1028 = vmul.f32 %v1016, 3.8918573e-05
      %v1029 = vadd.f32 %v1028, 0.001143296
      %v1030 = vmul.f32 %v1016, %v1029
      %v1031 = vadd.f32 %v1030, 0.014752088
      %v1032 = vmul.f32 %v1016, %v1031
      %v1033 = vadd.f32 %v1032, 0.112945676
      %v1034 = vmul.f32 %v1016, %v1033
      %v1035 = vadd.f32 %v1034, 0.4994258
      %v1036 = vmul.f32 %v1016, %v1035
      %v1037 = vadd.f32 %v1036, 1.0
      %v1038 = vrcp.pop %v1037
      %v1039 = vmul.f32 %v1037, %v1038
      %v1040 = vsub.f32 1.0, %v1039
      %v1041 = vmul.f32 %v1038, %v1040
      %v1042 = vadd.f32 %v1038, %v1041
      %vm1043 = vweird.f32 %v1037
      %vm1044 = vweird.f32 %v1038
      %vm1045 = vmor %vm1043, %vm1044
      %v1046 = vsel %vm1045, %v1038, %v1042
      %v1047 = vand.u32 2147483647, %v1037
      %vm1048 = vcmp.eq.f32.partialorder %v1047, 8.507059e+37
      %v1049 = vand.u32 %v1037, 2147483648
      %v1050 = vor.u32 1.1754944e-38, %v1049
      %v1051 = vsel %vm1048, %v1050, %v1046
      %v1052 = vmul.f32 %v1027, %v1051
      %v1053 = vmin.f32 %v1052, 1.0
      %v1054 = vmax.f32 %v1053, -1.0
      %v1055 = vmul.f32 %v454, %v454
      %v1056 = vmin.f32 16.0, %v1055
      %v1057 = vmul.f32 %v1056, 2.1237322e-06
      %v1058 = vadd.f32 %v1057, 0.00028619796
      %v1059 = vmul.f32 %v1056, %v1058
      %v1060 = vadd.f32 %v1059, 0.0036580483
      %v1061 = vmul.f32 %v1056, %v1060
      %v1062 = vadd.f32 %v1061, 0.05243302
      %v1063 = vmul.f32 %v1056, %v1062
      %v1064 = vadd.f32 %v1063, 0.18741608
      %v1065 = vmul.f32 %v1056, %v1064
      %v1066 = vadd.f32 %v1065, 1.1283791
      %v1067 = vmul.f32 %v454, %v1066
      %v1068 = vmul.f32 %v1056, 3.8918573e-05
      %v1069 = vadd.f32 %v1068, 0.001143296
      %v1070 = vmul.f32 %v1056, %v1069
      %v1071 = vadd.f32 %v1070, 0.014752088
      %v1072 = vmul.f32 %v1056, %v1071
      %v1073 = vadd.f32 %v1072, 0.112945676
      %v1074 = vmul.f32 %v1056, %v1073
      %v1075 = vadd.f32 %v1074, 0.4994258
      %v1076 = vmul.f32 %v1056, %v1075
      %v1077 = vadd.f32 %v1076, 1.0
      %v1078 = vrcp.pop %v1077
      %v1079 = vmul.f32 %v1077, %v1078
      %v1080 = vsub.f32 1.0, %v1079
      %v1081 = vmul.f32 %v1078, %v1080
      %v1082 = vadd.f32 %v1078, %v1081
      %vm1083 = vweird.f32 %v1077
      %vm1084 = vweird.f32 %v1078
      %vm1085 = vmor %vm1083, %vm1084
      %v1086 = vsel %vm1085, %v1078, %v1082
      %v1087 = vand.u32 2147483647, %v1077
      %vm1088 = vcmp.eq.f32.partialorder %v1087, 8.507059e+37
      %v1089 = vand.u32 %v1077, 2147483648
      %v1090 = vor.u32 1.1754944e-38, %v1089
      %v1091 = vsel %vm1088, %v1090, %v1086
      %v1092 = vmul.f32 %v1067, %v1091
      %v1093 = vmin.f32 %v1092, 1.0
      %v1094 = vmax.f32 %v1093, -1.0
      %v1095 = vadd.f32 %v494, 1.0
      %v1096 = vadd.f32 %v534, 1.0
      %v1097 = vadd.f32 %v574, 1.0
      %v1098 = vadd.f32 %v614, 1.0
      %v1099 = vadd.f32 %v654, 1.0
      %v1100 = vadd.f32 %v694, 1.0
      %v1101 = vadd.f32 %v734, 1.0
      %v1102 = vadd.f32 %v774, 1.0
      %v1103 = vadd.f32 %v814, 1.0
      %v1104 = vadd.f32 %v854, 1.0
      %v1105 = vadd.f32 %v894, 1.0
      %v1106 = vadd.f32 %v934, 1.0
      %v1107 = vadd.f32 %v974, 1.0
      %v1108 = vadd.f32 %v1014, 1.0
      %v1109 = vadd.f32 %v1054, 1.0
      %v1110 = vadd.f32 %v1094, 1.0
      %v1111 = vmul.f32 %v423, %v1095
      %v1112 = vmul.f32 %v424, %v1096
      %v1113 = vmul.f32 %v425, %v1097
      %v1114 = vmul.f32 %v426, %v1098
      %v1115 = vmul.f32 %v427, %v1099
      %v1116 = vmul.f32 %v428, %v1100
      %v1117 = vmul.f32 %v429, %v1101
      %v1118 = vmul.f32 %v430, %v1102
      %v1119 = vmul.f32 %v431, %v1103
      %v1120 = vmul.f32 %v432, %v1104
      %v1121 = vmul.f32 %v433, %v1105
      %v1122 = vmul.f32 %v434, %v1106
      %v1123 = vmul.f32 %v435, %v1107
      %v1124 = vmul.f32 %v436, %v1108
      %v1125 = vmul.f32 %v437, %v1109
      %v1126 = vmul.f32 %v438, %v1110
      %v1127 = vmul.f32 %v391, %v1111
      %v1128 = vmul.f32 %v393, %v1112
      %v1129 = vmul.f32 %v395, %v1113
      %v1130 = vmul.f32 %v397, %v1114
      %v1131 = vmul.f32 %v399, %v1115
      %v1132 = vmul.f32 %v401, %v1116
      %v1133 = vmul.f32 %v403, %v1117
      %v1134 = vmul.f32 %v405, %v1118
      %v1135 = vmul.f32 %v407, %v1119
      %v1136 = vmul.f32 %v409, %v1120
      %v1137 = vmul.f32 %v411, %v1121
      %v1138 = vmul.f32 %v413, %v1122
      %v1139 = vmul.f32 %v415, %v1123
      %v1140 = vmul.f32 %v417, %v1124
      %v1141 = vmul.f32 %v419, %v1125
      %v1142 = vmul.f32 %v421, %v1126
      %1143 = vst [vmem:[#allocation3] sm:$0xff] %v1127
      %1144 = vst [vmem:[#allocation3 + $0x8] sm:$0xff] %v1128
      %1145 = vst [vmem:[#allocation3 + $0x10] sm:$0xff] %v1129
      %1146 = vst [vmem:[#allocation3 + $0x18] sm:$0xff] %v1130
      %1147 = vst [vmem:[#allocation3 + $0x20] sm:$0xff] %v1131
      %1148 = vst [vmem:[#allocation3 + $0x28] sm:$0xff] %v1132
      %1149 = vst [vmem:[#allocation3 + $0x30] sm:$0xff] %v1133
      %1150 = vst [vmem:[#allocation3 + $0x38] sm:$0xff] %v1134
      %1151 = vst [vmem:[#allocation3 + $0x40] sm:$0xff] %v1135
      %1152 = vst [vmem:[#allocation3 + $0x48] sm:$0xff] %v1136
      %1153 = vst [vmem:[#allocation3 + $0x50] sm:$0xff] %v1137
      %1154 = vst [vmem:[#allocation3 + $0x58] sm:$0xff] %v1138
      %1155 = vst [vmem:[#allocation3 + $0x60] sm:$0xff] %v1139
      %1156 = vst [vmem:[#allocation3 + $0x68] sm:$0xff] %v1140
      %1157 = vst [vmem:[#allocation3 + $0x70] sm:$0xff] %v1141
      %1158 = vst [vmem:[#allocation3 + $0x78] sm:$0xff] %v1142
    $region21: #{tpu_custom_call.1} parent=1 // pred_fallthru
      _
    // Predicated region
    $region22: #{tpu_custom_call.1} parent=1 // pred_check
      _
    $region23: #{tpu_custom_call.1} parent=1 // pred_check_branch
      %1160 = sbr.rel (0) target = $region25
    $region24: #{tpu_custom_call.1} parent=1 // pred_region
      %1162 = vsyncadd [#allocation4], 0
      %s1163 = sshll.u32 [#allocation3], 4
      %s1164 = int_to_ptr.vmem [resolvable:$true] %s1163
      %s1165 = sshll.u32 %s3, 4
      %s1166 = int_to_ptr.hbm [resolvable:$true] %s1165
      %1171 = dma.vmem_to_hbm [thread:$0]  %s1164, 2048, %s1166, [#allocation4], 128, 128, 8
    $region25: #{tpu_custom_call.1} parent=1 // pred_fallthru
      _
    // Predicated region
    $region26: #{tpu_custom_call.1} parent=1 // pred_check
      _
    $region27: #{tpu_custom_call.1} parent=1 // pred_check_branch
      %1173 = sbr.rel (0) target = $region29
    $region28: #{tpu_custom_call.1} parent=1 // pred_region
      %1175 = dma.done [#allocation4], 2048
    $region29: #{tpu_custom_call.1} parent=1 // pred_fallthru
      _
    %1176 = vsyncpa [#allocation4], 1

</llo_original>
